<compile_context>
chip_gen: v5e
topology: v5e:2x2
jax: 0.10.0
libtpu: 0.0.40
codegen_flags: <defaults>
</compile_context>

<pallas_src>
from typing import NamedTuple

import jax
import jax.numpy as jnp
from jax.experimental import pallas as pl
from jax.experimental.pallas import tpu as pltpu


# --------------------------------------------------------------------------
# Small helpers
# --------------------------------------------------------------------------
def _round_up(n, m):
    return ((n + m - 1) // m) * m


def _nbytes(shape, dtype):
    n = 1
    for s in shape:
        n *= int(s)
    return n * jnp.dtype(dtype).itemsize


def _vmem_capacity_bytes():
    """Per-core VMEM capacity; falls back to the smallest (v7x) budget."""
    cap = 64 << 20
    try:
        info = pltpu.get_tpu_info()
        cap = int(getattr(info, "vmem_capacity_bytes", cap))
    except Exception:
        pass
    return cap


def _vmem_budget_bytes(cap):
    # Headroom for compiler-internal scratch: ~8 MiB on 64 MiB parts (v7x),
    # ~16 MiB on 128 MiB parts (v5e/v6e).
    return cap - max(8 << 20, cap // 8)


def _resident_needed(rt, d_model_p, d_ff_p, x_dtype, out_dtype, cdtype):
    """VMEM estimate: resident (single-buffered) weights + pipelined x/out."""
    io = (2 * _nbytes((rt, d_model_p), x_dtype)
          + 2 * _nbytes((rt, d_model_p), out_dtype))
    weights = (_nbytes((d_model_p, d_ff_p), cdtype)
               + _nbytes((d_ff_p, d_model_p), cdtype)
               + _nbytes((1, d_ff_p), jnp.float32)
               + _nbytes((1, d_model_p), jnp.float32))
    inter = (6 * rt * d_ff_p          # h in f32 + bf16
             + 6 * rt * d_model_p)    # x bf16 cast + fc2 f32 result
    return io + weights + inter + (2 << 20)


def _streamed_needed(rt, d_model_p, ff_slab, x_dtype, out_dtype, cdtype):
    """VMEM estimate: d_ff-streamed weights (double-buffered slabs) + acc."""
    io = (2 * _nbytes((rt, d_model_p), x_dtype)
          + 2 * _nbytes((rt, d_model_p), out_dtype))
    weights = (2 * (_nbytes((d_model_p, ff_slab), cdtype)
                    + _nbytes((ff_slab, d_model_p), cdtype)
                    + _nbytes((1, ff_slab), jnp.float32))
               + _nbytes((1, d_model_p), jnp.float32))
    acc = 4 * rt * d_model_p
    inter = 6 * rt * ff_slab + 6 * rt * d_model_p
    return io + weights + acc + inter + (2 << 20)


# --------------------------------------------------------------------------
# Kernels
# --------------------------------------------------------------------------
def _ffn_resident_kernel(x_ref, w1_ref, b1_ref, w2_ref, b2_ref, o_ref):
    """o = relu(x @ W1 + b1) @ W2 + b2, weights fully VMEM-resident."""
    x = x_ref[...].astype(w1_ref.dtype)                       # VPU cast to bf16
    h = jnp.dot(x, w1_ref[...], preferred_element_type=jnp.float32)
    h = jnp.maximum(h + b1_ref[...], 0.0)                     # f32 bias + ReLU
    y = jnp.dot(h.astype(w2_ref.dtype), w2_ref[...],
                preferred_element_type=jnp.float32) + b2_ref[...]
    o_ref[...] = y.astype(o_ref.dtype)


def _ffn_streamed_kernel(x_ref, w1_ref, b1_ref, w2_ref, b2_ref, o_ref, acc_ref):
    """Same computation with d_ff streamed as grid axis 1 (reduction)."""
    k = pl.program_id(1)
    x = x_ref[...].astype(w1_ref.dtype)
    h = jnp.dot(x, w1_ref[...], preferred_element_type=jnp.float32)
    h = jnp.maximum(h + b1_ref[...], 0.0)
    part = jnp.dot(h.astype(w2_ref.dtype), w2_ref[...],
                   preferred_element_type=jnp.float32)

    @pl.when(k == 0)
    def _():
        acc_ref[...] = part            # first slab writes (no zero-init pass)

    @pl.when(k > 0)
    def _():
        acc_ref[...] += part

    @pl.when(k == pl.num_programs(1) - 1)
    def _():
        o_ref[...] = (acc_ref[...] + b2_ref[...]).astype(o_ref.dtype)


# --------------------------------------------------------------------------
# Parameter preparation (do once; weights are constant across calls)
# --------------------------------------------------------------------------
class FFNParams(NamedTuple):
    w1: jax.Array          # (d_model_p, d_ff_p)  compute dtype (bf16)
    b1: jax.Array          # (1, d_ff_p)          f32
    w2: jax.Array          # (d_ff_p, d_model_p)  compute dtype (bf16)
    b2: jax.Array          # (1, d_model_p)       f32
    d_model: int
    d_ff: int
    mode: str              # "resident" | "streamed"
    ff_slab: int           # d_ff slab width (== d_ff_p when resident)
    max_row_tile: int


def prepare_ffn_params(w1, b1, w2, b2, *, compute_dtype=jnp.bfloat16,
                       max_row_tile=512, x_dtype=jnp.float32,
                       out_dtype=jnp.float32, force_mode=None,
                       force_ff_slab=None):
    """Cast + pad the FFN weights once and pick resident vs streamed mode."""
    d_model, d_ff = w1.shape
    assert w2.shape == (d_ff, d_model)
    assert b1.shape == (d_ff,) and b2.shape == (d_model,)

    d_model_p = _round_up(d_model, 128)
    d_ff_p = _round_up(d_ff, 128)

    cap = _vmem_capacity_bytes()
    budget = _vmem_budget_bytes(cap)
    rt = max(_round_up(max_row_tile, 8), 8)

    resident_fits = (_resident_needed(rt, d_model_p, d_ff_p, x_dtype,
                                      out_dtype, compute_dtype) <= budget)
    mode = force_mode if force_mode is not None else (
        "resident" if resident_fits else "streamed")

    if mode == "resident":
        ff_slab = d_ff_p
    else:
        if force_ff_slab is not None:
            ff_slab = force_ff_slab
        else:
            # >=512-wide slabs keep the 256x256 MXU fed on v6e/v7x.
            ff_slab = 512
            for cand in (2048, 1024):
                if _streamed_needed(rt, d_model_p, cand, x_dtype, out_dtype,
                                    compute_dtype) <= budget:
                    ff_slab = cand
                    break
        d_ff_p = _round_up(d_ff, ff_slab)

    # Zero padding is exact: padded d_ff units get b1 = 0, relu(0) = 0 and
    # contribute 0 to fc2; padded d_model columns of x multiply zero rows.
    w1p = jnp.pad(w1.astype(compute_dtype),
                  ((0, d_model_p - d_model), (0, d_ff_p - d_ff)))
    w2p = jnp.pad(w2.astype(compute_dtype),
                  ((0, d_ff_p - d_ff), (0, d_model_p - d_model)))
    b1p = jnp.pad(b1.astype(jnp.float32), (0, d_ff_p - d_ff)).reshape(1, d_ff_p)
    b2p = jnp.pad(b2.astype(jnp.float32),
                  (0, d_model_p - d_model)).reshape(1, d_model_p)

    return FFNParams(w1p, b1p, w2p, b2p, d_model, d_ff, mode, ff_slab, rt)


# --------------------------------------------------------------------------
# Forward wrapper
# --------------------------------------------------------------------------
def positionwise_ffn(x, params: FFNParams, *, row_tile=None):
    """x: (..., d_model) -> fc2(relu(fc1(x))), same shape/dtype as x."""
    orig_shape = x.shape
    out_dtype = x.dtype
    d_model = params.d_model
    assert orig_shape[-1] == d_model
    d_model_p, d_ff_p = params.w1.shape
    cdtype = params.w1.dtype

    x2 = x.reshape(-1, d_model)
    n_rows = x2.shape[0]

    cap = _vmem_capacity_bytes()
    budget = _vmem_budget_bytes(cap)

    rt = params.max_row_tile if row_tile is None else min(row_tile,
                                                          params.max_row_tile)
    rt = min(rt, _round_up(n_rows, 8))
    rt = max(_round_up(rt, 8), 8)
    if params.mode == "streamed":
        while rt > 8 and _streamed_needed(rt, d_model_p, params.ff_slab,
                                          x2.dtype, out_dtype, cdtype) > budget:
            rt = max(_round_up(rt // 2, 8), 8)

    n_rows_p = _round_up(n_rows, rt)
    n_row_tiles = n_rows_p // rt

    # Pad x only when necessary; keep its dtype (cast to bf16 in-kernel).
    if n_rows_p != n_rows or d_model_p != d_model:
        xp = jnp.pad(x2, ((0, n_rows_p - n_rows), (0, d_model_p - d_model)))
    else:
        xp = x2

    w_total_bytes = (_nbytes(params.w1.shape, params.w1.dtype)
                     + _nbytes(params.w2.shape, params.w2.dtype)
                     + _nbytes(params.b1.shape, params.b1.dtype)
                     + _nbytes(params.b2.shape, params.b2.dtype))
    weight_passes = 1 if params.mode == "resident" else n_row_tiles
    cost = pl.CostEstimate(
        flops=4 * n_rows_p * d_model_p * d_ff_p,
        transcendentals=0,
        bytes_accessed=(_nbytes((n_rows_p, d_model_p), x2.dtype)
                        + _nbytes((n_rows_p, d_model_p), out_dtype)
                        + weight_passes * w_total_bytes))

    if params.mode == "resident":
        needed = _resident_needed(rt, d_model_p, d_ff_p, x2.dtype, out_dtype,
                                  cdtype)
    else:
        needed = _streamed_needed(rt, d_model_p, params.ff_slab, x2.dtype,
                                  out_dtype, cdtype)

    def build_and_run(single_buffer_weights):
        # Constant-index (weight) blocks never benefit from double-buffering;
        # Buffered(1) halves their VMEM residency.
        pipe = pl.Buffered(1) if single_buffer_weights else None

        def const_spec(shape, index_map):
            if pipe is None:
                return pl.BlockSpec(shape, index_map)
            return pl.BlockSpec(shape, index_map, pipeline_mode=pipe)

        if params.mode == "resident":
            grid = (n_row_tiles,)
            in_specs = [
                pl.BlockSpec((rt, d_model_p), lambda i: (i, 0)),       # x rows
                const_spec((d_model_p, d_ff_p), lambda i: (0, 0)),     # W1
                const_spec((1, d_ff_p), lambda i: (0, 0)),             # b1
                const_spec((d_ff_p, d_model_p), lambda i: (0, 0)),     # W2
                const_spec((1, d_model_p), lambda i: (0, 0)),          # b2
            ]
            out_specs = pl.BlockSpec((rt, d_model_p), lambda i: (i, 0))
            scratch_shapes = []
            kernel = _ffn_resident_kernel
            dims = ("parallel",)
            extra = 0 if single_buffer_weights else w_total_bytes
        else:
            ff_slab = params.ff_slab
            grid = (n_row_tiles, d_ff_p // ff_slab)
            in_specs = [
                pl.BlockSpec((rt, d_model_p), lambda i, k: (i, 0)),       # x
                pl.BlockSpec((d_model_p, ff_slab), lambda i, k: (0, k)),  # W1
                pl.BlockSpec((1, ff_slab), lambda i, k: (0, k)),          # b1
                pl.BlockSpec((ff_slab, d_model_p), lambda i, k: (k, 0)),  # W2
                const_spec((1, d_model_p), lambda i, k: (0, 0)),          # b2
            ]
            out_specs = pl.BlockSpec((rt, d_model_p), lambda i, k: (i, 0))
            scratch_shapes = [pltpu.VMEM((rt, d_model_p), jnp.float32)]
            kernel = _ffn_streamed_kernel
            dims = ("parallel", "arbitrary")
            extra = (0 if single_buffer_weights
                     else _nbytes(params.b2.shape, params.b2.dtype))

        vmem_limit = max(needed + extra, 32 << 20)
        vmem_limit = int(min(vmem_limit + (8 << 20), cap - (2 << 20)))
        vmem_limit = max(vmem_limit, needed + extra)   # never below requirement

        return pl.pallas_call(
            kernel,
            out_shape=jax.ShapeDtypeStruct((n_rows_p, d_model_p), out_dtype),
            grid_spec=pltpu.PrefetchScalarGridSpec(
                num_scalar_prefetch=0,
                grid=grid,
                in_specs=in_specs,
                out_specs=out_specs,
                scratch_shapes=scratch_shapes,
            ),
            compiler_params=pltpu.CompilerParams(
                dimension_semantics=dims,
                vmem_limit_bytes=vmem_limit,
            ),
            cost_estimate=cost,
        )(xp, params.w1, params.b1, params.w2, params.b2)

    try:
        out_p = build_and_run(True)
    except Exception:
        # Safety net for jax versions where Buffered(1) on a constant-index
        # BlockSpec is rejected: fall back to default (double) buffering.
        out_p = build_and_run(False)

    if n_rows_p != n_rows or d_model_p != d_model:
        out_p = out_p[:n_rows, :d_model]
    return out_p.reshape(orig_shape)


# --------------------------------------------------------------------------
# Self-test
# --------------------------------------------------------------------------
if __name__ == "__main__":
    key = jax.random.PRNGKey(0)

    def ref_bf16_forward(x, w1, b1, w2, b2):
        # Mirrors the kernel's bf16-MXU / f32-accumulate numerics.
        xb = x.astype(jnp.bfloat16)
        h = jnp.maximum(
            jnp.dot(xb, w1.astype(jnp.bfloat16),
                    preferred_element_type=jnp.float32) + b1, 0.0)
        y = jnp.dot(h.astype(jnp.bfloat16), w2.astype(jnp.bfloat16),
                    preferred_element_type=jnp.float32) + b2
        return y.astype(x.dtype)

    def ref_f32_forward(x, w1, b1, w2, b2):
        # The pure-f32 PyTorch forward.
        return jnp.maximum(x @ w1 + b1, 0.0) @ w2 + b2

    def run_case(salt, d_model, d_ff, batch=2, seq=8, **prep_kwargs):
        kx, kw1, kb1, kw2, kb2 = jax.random.split(jax.random.fold_in(key, salt), 5)
        x = jax.random.normal(kx, (batch, seq, d_model), dtype=jnp.float32)
        w1 = jax.random.normal(kw1, (d_model, d_ff), dtype=jnp.float32) * 0.1
        b1 = jax.random.normal(kb1, (d_ff,), dtype=jnp.float32) * 0.1
        w2 = jax.random.normal(kw2, (d_ff, d_model), dtype=jnp.float32) * 0.1
        b2 = jax.random.normal(kb2, (d_model,), dtype=jnp.float32) * 0.1

        params = prepare_ffn_params(w1, b1, w2, b2, **prep_kwargs)  # once
        out = jax.block_until_ready(positionwise_ffn(x, params))
        assert out.shape == x.shape and out.dtype == x.dtype

        ref_b = ref_bf16_forward(x, w1, b1, w2, b2)
        ref_f = ref_f32_forward(x, w1, b1, w2, b2)
        assert jnp.allclose(out, ref_b, atol=2e-3, rtol=2e-3), \
            f"case {salt} ({params.mode}): mismatch vs bf16 reference"
        assert jnp.allclose(out, ref_f, atol=3e-2, rtol=3e-2), \
            f"case {salt} ({params.mode}): mismatch vs f32 reference"

    # Small shapes consistent with the module: (batch, seq, d_model), d_ff hidden.
    run_case(0, d_model=32, d_ff=64)                       # resident fused path
    run_case(1, d_model=32, d_ff=256,                      # streamed d_ff path (2 slabs)
             force_mode="streamed", force_ff_slab=128)

    print("KERNEL_OK")
</pallas_src>

<mosaic_0001>
module attributes {stable_mosaic.version = 11 : i64} {
  func.func @_ffn_resident_kernel(%arg0: i32, %arg1: memref<16x128xf32, #tpu.memory_space<vmem>>, %arg2: memref<128x128xbf16, #tpu.memory_space<vmem>>, %arg3: memref<1x128xf32, #tpu.memory_space<vmem>>, %arg4: memref<128x128xbf16, #tpu.memory_space<vmem>>, %arg5: memref<1x128xf32, #tpu.memory_space<vmem>>, %arg6: memref<16x128xf32, #tpu.memory_space<vmem>>) attributes {dimension_semantics = [#tpu.dimension_semantics<parallel>], iteration_bounds = array<i64: 1>, scalar_prefetch = 0 : i64, scratch_operands = 0 : i64, tpu.core_type = #tpu.core_type<tc>, window_params = [{transform_indices = @transform_0, window_bounds = array<i64: 16, 128>}, {pipeline_mode = #tpu.pipeline_mode<synchronous>, transform_indices = @transform_1, window_bounds = array<i64: 128, 128>}, {pipeline_mode = #tpu.pipeline_mode<synchronous>, transform_indices = @transform_2, window_bounds = array<i64: 1, 128>}, {pipeline_mode = #tpu.pipeline_mode<synchronous>, transform_indices = @transform_3, window_bounds = array<i64: 128, 128>}, {pipeline_mode = #tpu.pipeline_mode<synchronous>, transform_indices = @transform_4, window_bounds = array<i64: 1, 128>}, {transform_indices = @transform_5, window_bounds = array<i64: 16, 128>}]} {
    %c0 = arith.constant 0 : index
    %c0_0 = arith.constant 0 : index
    %0 = vector.load %arg1[%c0, %c0_0] : memref<16x128xf32, #tpu.memory_space<vmem>>, vector<16x128xf32>
    %1 = arith.truncf %0 : vector<16x128xf32> to vector<16x128xbf16>
    %c0_1 = arith.constant 0 : index
    %c0_2 = arith.constant 0 : index
    %2 = vector.load %arg2[%c0_1, %c0_2] : memref<128x128xbf16, #tpu.memory_space<vmem>>, vector<128x128xbf16>
    %cst = arith.constant dense<0.000000e+00> : vector<16x128xf32>
    %3 = tpu.matmul %1, %2, %cst {dimension_numbers = #tpu.dot_dimension_numbers<[1], [0], [0], [1], [0, 0, 1, 1], [], []>} : vector<16x128xbf16>, vector<128x128xbf16>, vector<16x128xf32> -> vector<16x128xf32>
    %c0_3 = arith.constant 0 : index
    %c0_4 = arith.constant 0 : index
    %4 = vector.load %arg3[%c0_3, %c0_4] : memref<1x128xf32, #tpu.memory_space<vmem>>, vector<1x128xf32>
    %5 = vector.broadcast %4 : vector<1x128xf32> to vector<16x128xf32>
    %6 = arith.addf %3, %5 : vector<16x128xf32>
    %cst_5 = arith.constant 0.000000e+00 : f32
    %7 = vector.broadcast %cst_5 : f32 to vector<16x128xf32>
    %8 = arith.maximumf %6, %7 : vector<16x128xf32>
    %9 = arith.truncf %8 : vector<16x128xf32> to vector<16x128xbf16>
    %c0_6 = arith.constant 0 : index
    %c0_7 = arith.constant 0 : index
    %10 = vector.load %arg4[%c0_6, %c0_7] : memref<128x128xbf16, #tpu.memory_space<vmem>>, vector<128x128xbf16>
    %cst_8 = arith.constant dense<0.000000e+00> : vector<16x128xf32>
    %11 = tpu.matmul %9, %10, %cst_8 {dimension_numbers = #tpu.dot_dimension_numbers<[1], [0], [0], [1], [0, 0, 1, 1], [], []>} : vector<16x128xbf16>, vector<128x128xbf16>, vector<16x128xf32> -> vector<16x128xf32>
    %c0_9 = arith.constant 0 : index
    %c0_10 = arith.constant 0 : index
    %12 = vector.load %arg5[%c0_9, %c0_10] : memref<1x128xf32, #tpu.memory_space<vmem>>, vector<1x128xf32>
    %13 = vector.broadcast %12 : vector<1x128xf32> to vector<16x128xf32>
    %14 = arith.addf %11, %13 : vector<16x128xf32>
    %c0_11 = arith.constant 0 : index
    %c0_12 = arith.constant 0 : index
    %15 = vector.load %arg6[%c0_11, %c0_12] : memref<16x128xf32, #tpu.memory_space<vmem>>, vector<16x128xf32>
    tpu.vector_store %arg6[%c0_11, %c0_12], %14 {strides = array<i32>} : memref<16x128xf32, #tpu.memory_space<vmem>>, vector<16x128xf32>,
    return
  }
  func.func @transform_0(%arg0: i32) -> (i32, i32) {
    %c0_i32 = arith.constant 0 : i32
    %c0_i32_0 = arith.constant 0 : i32
    return %arg0, %c0_i32 : i32, i32
  }
  func.func @transform_1(%arg0: i32) -> (i32, i32) {
    %c0_i32 = arith.constant 0 : i32
    %c0_i32_0 = arith.constant 0 : i32
    %c0_i32_1 = arith.constant 0 : i32
    return %c0_i32, %c0_i32_0 : i32, i32
  }
  func.func @transform_2(%arg0: i32) -> (i32, i32) {
    %c0_i32 = arith.constant 0 : i32
    %c0_i32_0 = arith.constant 0 : i32
    %c0_i32_1 = arith.constant 0 : i32
    return %c0_i32, %c0_i32_0 : i32, i32
  }
  func.func @transform_3(%arg0: i32) -> (i32, i32) {
    %c0_i32 = arith.constant 0 : i32
    %c0_i32_0 = arith.constant 0 : i32
    %c0_i32_1 = arith.constant 0 : i32
    return %c0_i32, %c0_i32_0 : i32, i32
  }
  func.func @transform_4(%arg0: i32) -> (i32, i32) {
    %c0_i32 = arith.constant 0 : i32
    %c0_i32_0 = arith.constant 0 : i32
    %c0_i32_1 = arith.constant 0 : i32
    return %c0_i32, %c0_i32_0 : i32, i32
  }
  func.func @transform_5(%arg0: i32) -> (i32, i32) {
    %c0_i32 = arith.constant 0 : i32
    %c0_i32_0 = arith.constant 0 : i32
    return %arg0, %c0_i32 : i32, i32
  }
}

module attributes {stable_mosaic.version = 11 : i64} {
  func.func @_ffn_resident_kernel(%arg0: i32, %arg1: memref<16x128xf32, #tpu.memory_space<vmem>>, %arg2: memref<128x128xbf16, #tpu.memory_space<vmem>>, %arg3: memref<1x128xf32, #tpu.memory_space<vmem>>, %arg4: memref<128x128xbf16, #tpu.memory_space<vmem>>, %arg5: memref<1x128xf32, #tpu.memory_space<vmem>>, %arg6: memref<16x128xf32, #tpu.memory_space<vmem>>) attributes {dimension_semantics = [#tpu.dimension_semantics<parallel>], iteration_bounds = array<i64: 1>, scalar_prefetch = 0 : i64, scratch_operands = 0 : i64, tpu.core_type = #tpu.core_type<tc>, window_params = [{transform_indices = @transform_0, window_bounds = array<i64: 16, 128>}, {pipeline_mode = #tpu.pipeline_mode<synchronous>, transform_indices = @transform_1, window_bounds = array<i64: 128, 128>}, {pipeline_mode = #tpu.pipeline_mode<synchronous>, transform_indices = @transform_2, window_bounds = array<i64: 1, 128>}, {pipeline_mode = #tpu.pipeline_mode<synchronous>, transform_indices = @transform_3, window_bounds = array<i64: 128, 128>}, {pipeline_mode = #tpu.pipeline_mode<synchronous>, transform_indices = @transform_4, window_bounds = array<i64: 1, 128>}, {transform_indices = @transform_5, window_bounds = array<i64: 16, 128>}]} {
    %c0 = arith.constant 0 : index
    %c0_0 = arith.constant 0 : index
    %0 = vector.load %arg1[%c0, %c0_0] : memref<16x128xf32, #tpu.memory_space<vmem>>, vector<16x128xf32>
    %1 = arith.truncf %0 : vector<16x128xf32> to vector<16x128xbf16>
    %c0_1 = arith.constant 0 : index
    %c0_2 = arith.constant 0 : index
    %2 = vector.load %arg2[%c0_1, %c0_2] : memref<128x128xbf16, #tpu.memory_space<vmem>>, vector<128x128xbf16>
    %cst = arith.constant dense<0.000000e+00> : vector<16x128xf32>
    %3 = tpu.matmul %1, %2, %cst {dimension_numbers = #tpu.dot_dimension_numbers<[1], [0], [0], [1], [0, 0, 1, 1], [], []>} : vector<16x128xbf16>, vector<128x128xbf16>, vector<16x128xf32> -> vector<16x128xf32>
    %c0_3 = arith.constant 0 : index
    %c0_4 = arith.constant 0 : index
    %4 = vector.load %arg3[%c0_3, %c0_4] : memref<1x128xf32, #tpu.memory_space<vmem>>, vector<1x128xf32>
    %5 = vector.broadcast %4 : vector<1x128xf32> to vector<16x128xf32>
    %6 = arith.addf %3, %5 : vector<16x128xf32>
    %cst_5 = arith.constant 0.000000e+00 : f32
    %7 = vector.broadcast %cst_5 : f32 to vector<16x128xf32>
    %8 = arith.maximumf %6, %7 : vector<16x128xf32>
    %9 = arith.truncf %8 : vector<16x128xf32> to vector<16x128xbf16>
    %c0_6 = arith.constant 0 : index
    %c0_7 = arith.constant 0 : index
    %10 = vector.load %arg4[%c0_6, %c0_7] : memref<128x128xbf16, #tpu.memory_space<vmem>>, vector<128x128xbf16>
    %cst_8 = arith.constant dense<0.000000e+00> : vector<16x128xf32>
    %11 = tpu.matmul %9, %10, %cst_8 {dimension_numbers = #tpu.dot_dimension_numbers<[1], [0], [0], [1], [0, 0, 1, 1], [], []>} : vector<16x128xbf16>, vector<128x128xbf16>, vector<16x128xf32> -> vector<16x128xf32>
    %c0_9 = arith.constant 0 : index
    %c0_10 = arith.constant 0 : index
    %12 = vector.load %arg5[%c0_9, %c0_10] : memref<1x128xf32, #tpu.memory_space<vmem>>, vector<1x128xf32>
    %13 = vector.broadcast %12 : vector<1x128xf32> to vector<16x128xf32>
    %14 = arith.addf %11, %13 : vector<16x128xf32>
    %c0_11 = arith.constant 0 : index
    %c0_12 = arith.constant 0 : index
    %15 = vector.load %arg6[%c0_11, %c0_12] : memref<16x128xf32, #tpu.memory_space<vmem>>, vector<16x128xf32>
    tpu.vector_store %arg6[%c0_11, %c0_12], %14 {strides = array<i32>} : memref<16x128xf32, #tpu.memory_space<vmem>>, vector<16x128xf32>,
    return
  }
  func.func @transform_0(%arg0: i32) -> (i32, i32) {
    %c0_i32 = arith.constant 0 : i32
    %c0_i32_0 = arith.constant 0 : i32
    return %arg0, %c0_i32 : i32, i32
  }
  func.func @transform_1(%arg0: i32) -> (i32, i32) {
    %c0_i32 = arith.constant 0 : i32
    %c0_i32_0 = arith.constant 0 : i32
    %c0_i32_1 = arith.constant 0 : i32
    return %c0_i32, %c0_i32_0 : i32, i32
  }
  func.func @transform_2(%arg0: i32) -> (i32, i32) {
    %c0_i32 = arith.constant 0 : i32
    %c0_i32_0 = arith.constant 0 : i32
    %c0_i32_1 = arith.constant 0 : i32
    return %c0_i32, %c0_i32_0 : i32, i32
  }
  func.func @transform_3(%arg0: i32) -> (i32, i32) {
    %c0_i32 = arith.constant 0 : i32
    %c0_i32_0 = arith.constant 0 : i32
    %c0_i32_1 = arith.constant 0 : i32
    return %c0_i32, %c0_i32_0 : i32, i32
  }
  func.func @transform_4(%arg0: i32) -> (i32, i32) {
    %c0_i32 = arith.constant 0 : i32
    %c0_i32_0 = arith.constant 0 : i32
    %c0_i32_1 = arith.constant 0 : i32
    return %c0_i32, %c0_i32_0 : i32, i32
  }
  func.func @transform_5(%arg0: i32) -> (i32, i32) {
    %c0_i32 = arith.constant 0 : i32
    %c0_i32_0 = arith.constant 0 : i32
    return %arg0, %c0_i32 : i32, i32
  }
}

</mosaic_0001>

<llo_original>
// kernel: tpu_custom_call.1
$region0: #{tpu_custom_call.1}
  #allocation0 [shape = 'u32[]', space=smem, size = 0x4, offset = 0x4, fixed_abs, tag = 'smem constant byte address 0x4 - core index']
  #allocation1 [shape = 'u32[72,128]{1,0:T(1,128)}', space=vmem, size = 0x9000, scoped, tag = 'internal scratch']
  %s0 = inlined_call_operand.hbm [shape: f32[16,128], index: 0, kind: input, shape index: {}]
  %s1 = inlined_call_operand.hbm [shape: bf16[128,128], index: 1, kind: input, shape index: {}]
  %s2 = inlined_call_operand.vmem [shape: f32[1,128], index: 2, kind: input, shape index: {}]
  %s3 = inlined_call_operand.hbm [shape: bf16[128,128], index: 3, kind: input, shape index: {}]
  %s4 = inlined_call_operand.vmem [shape: f32[1,128], index: 4, kind: input, shape index: {}]
  %s5 = inlined_call_operand.hbm [shape: f32[16,128], index: 5, kind: output, shape index: {}]
  %s6 = sld [smem:[#allocation0]]
  $region42: #{tpu_custom_call.1} parent=0
    _
  %s8 = ssub.s32 1, %s6
  %s9 = scalar_select 0, %s8, %s6
  $region1: #{tpu_custom_call.1} parent=0
    #allocation2 [shape = 'u8[8192]{0}', space=vmem, size = 0x2000, scoped, tag = 'input window, operand 0, single buffered']
    #allocation3 [shape = 's32[1]{0}', space=sflag, size = 0x4, scoped, tag = 'scoped memory for tpu_custom_call.1']
    #allocation4 [shape = 's32[1]{0}', space=sflag, size = 0x4, scoped, tag = 'scoped memory for tpu_custom_call.1']
    #allocation5 [shape = 'u8[32768]{0}', space=vmem, size = 0x8000, scoped, tag = 'input window, operand 1, single buffered']
    #allocation6 [shape = 's32[1]{0}', space=sflag, size = 0x4, scoped, tag = 'scoped memory for tpu_custom_call.1']
    #allocation7 [shape = 'u8[32768]{0}', space=vmem, size = 0x8000, scoped, tag = 'input window, operand 3, single buffered']
    #allocation8 [shape = 'u8[8192]{0}', space=vmem, size = 0x2000, scoped, tag = 'output window, operand 0, single buffered']
    %10 = vsyncpa [#allocation3], 0
    %11 = vsyncpa [#allocation6], 0
    %12 = vsyncpa [#allocation4], 0
    // Predicated region
    $region2: #{tpu_custom_call.1} parent=1 // pred_check
      _
    $region3: #{tpu_custom_call.1} parent=1 // pred_check_branch
      %14 = sbr.rel (0) target = $region5
    $region4: #{tpu_custom_call.1} parent=1 // pred_region
      %16 = vsyncadd [#allocation3], 0
      %s17 = sshll.u32 %s0, 4
      %s18 = int_to_ptr.hbm [resolvable:$true] %s17
      %s19 = sshll.u32 [#allocation2], 4
      %s20 = int_to_ptr.vmem [resolvable:$true] %s19
      %25 = dma.hbm_to_vmem [thread:$0]  %s18, 256, %s20, [#allocation3], 128, 128, 8
    $region5: #{tpu_custom_call.1} parent=1 // pred_fallthru
      _
    // Predicated region
    $region6: #{tpu_custom_call.1} parent=1 // pred_check
      _
    $region7: #{tpu_custom_call.1} parent=1 // pred_check_branch
      %27 = sbr.rel (0) target = $region9
    $region8: #{tpu_custom_call.1} parent=1 // pred_region
      %29 = vsyncadd [#allocation6], 0
      %s30 = sshll.u32 %s1, 4
      %s31 = int_to_ptr.hbm [resolvable:$true] %s30
      %s32 = sshll.u32 [#allocation5], 4
      %s33 = int_to_ptr.vmem [resolvable:$true] %s32
      %38 = dma.hbm_to_vmem [thread:$0]  %s31, 1024, %s33, [#allocation6], 64, 64, 4
    $region9: #{tpu_custom_call.1} parent=1 // pred_fallthru
      _
    // Predicated region
    $region10: #{tpu_custom_call.1} parent=1 // pred_check
      _
    $region11: #{tpu_custom_call.1} parent=1 // pred_check_branch
      %40 = sbr.rel (0) target = $region13
    $region12: #{tpu_custom_call.1} parent=1 // pred_region
      _
    $region13: #{tpu_custom_call.1} parent=1 // pred_fallthru
      _
    // Predicated region
    $region14: #{tpu_custom_call.1} parent=1 // pred_check
      _
    $region15: #{tpu_custom_call.1} parent=1 // pred_check_branch
      %42 = sbr.rel (0) target = $region17
    $region16: #{tpu_custom_call.1} parent=1 // pred_region
      %44 = vsyncadd [#allocation6], 0
      %s45 = sshll.u32 %s3, 4
      %s46 = int_to_ptr.hbm [resolvable:$true] %s45
      %s47 = sshll.u32 [#allocation7], 4
      %s48 = int_to_ptr.vmem [resolvable:$true] %s47
      %53 = dma.hbm_to_vmem [thread:$0]  %s46, 1024, %s48, [#allocation6], 64, 64, 4
    $region17: #{tpu_custom_call.1} parent=1 // pred_fallthru
      _
    // Predicated region
    $region18: #{tpu_custom_call.1} parent=1 // pred_check
      _
    $region19: #{tpu_custom_call.1} parent=1 // pred_check_branch
      %55 = sbr.rel (0) target = $region21
    $region20: #{tpu_custom_call.1} parent=1 // pred_region
      _
    $region21: #{tpu_custom_call.1} parent=1 // pred_fallthru
      _
    // Predicated region
    $region22: #{tpu_custom_call.1} parent=1 // pred_check
      _
    $region23: #{tpu_custom_call.1} parent=1 // pred_check_branch
      %57 = sbr.rel (0) target = $region25
    $region24: #{tpu_custom_call.1} parent=1 // pred_region
      %59 = dma.done [#allocation3], 256
    $region25: #{tpu_custom_call.1} parent=1 // pred_fallthru
      _
    // Predicated region
    $region26: #{tpu_custom_call.1} parent=1 // pred_check
      _
    $region27: #{tpu_custom_call.1} parent=1 // pred_check_branch
      %61 = sbr.rel (0) target = $region29
    $region28: #{tpu_custom_call.1} parent=1 // pred_region
      %63 = dma.done [#allocation6], 1024
    $region29: #{tpu_custom_call.1} parent=1 // pred_fallthru
      _
    // Predicated region
    $region30: #{tpu_custom_call.1} parent=1 // pred_check
      _
    $region31: #{tpu_custom_call.1} parent=1 // pred_check_branch
      %65 = sbr.rel (0) target = $region33
    $region32: #{tpu_custom_call.1} parent=1 // pred_region
      %67 = dma.done [#allocation6], 1024
    $region33: #{tpu_custom_call.1} parent=1 // pred_fallthru
      _
    %v68 = vld [vmem:[#allocation2] sm:$0xff]
    %v69 = vld [vmem:[#allocation2 + $0x8] sm:$0xff]
    %v70 = vpack.c.bf16 %v69, %v68
    %v71 = vld [vmem:[#allocation5] sm:$0xf]
    %v72 = vld [vmem:[#allocation5 + $0x4] sm:$0xf]
    %v73 = vld [vmem:[#allocation5 + $0x8] sm:$0xf]
    %v74 = vld [vmem:[#allocation5 + $0xc] sm:$0xf]
    %v75 = vld [vmem:[#allocation5 + $0x10] sm:$0xf]
    %v76 = vld [vmem:[#allocation5 + $0x14] sm:$0xf]
    %v77 = vld [vmem:[#allocation5 + $0x18] sm:$0xf]
    %v78 = vld [vmem:[#allocation5 + $0x1c] sm:$0xf]
    %v79 = vld [vmem:[#allocation5 + $0x20] sm:$0xf]
    %v80 = vld [vmem:[#allocation5 + $0x24] sm:$0xf]
    %v81 = vld [vmem:[#allocation5 + $0x28] sm:$0xf]
    %v82 = vld [vmem:[#allocation5 + $0x2c] sm:$0xf]
    %v83 = vld [vmem:[#allocation5 + $0x30] sm:$0xf]
    %v84 = vld [vmem:[#allocation5 + $0x34] sm:$0xf]
    %v85 = vld [vmem:[#allocation5 + $0x38] sm:$0xf]
    %v86 = vld [vmem:[#allocation5 + $0x3c] sm:$0xf]
    %v87 = vld [vmem:[%s2] sm:$0x1]
    %v89 = vperm.slane %v87, 0
    %v107 = vunpack.c.l.b16 %v71
    %v108 = vunpack.c.l.b16 %v72
    %v109 = vunpack.c.l.b16 %v73
    %v110 = vunpack.c.l.b16 %v74
    %v111 = vunpack.c.l.b16 %v75
    %v112 = vunpack.c.l.b16 %v76
    %v113 = vunpack.c.l.b16 %v77
    %v114 = vunpack.c.l.b16 %v78
    %v115 = vunpack.c.l.b16 %v79
    %v116 = vunpack.c.l.b16 %v80
    %v117 = vunpack.c.l.b16 %v81
    %v118 = vunpack.c.l.b16 %v82
    %v119 = vunpack.c.l.b16 %v83
    %v120 = vunpack.c.l.b16 %v84
    %v121 = vunpack.c.l.b16 %v85
    %v122 = vunpack.c.l.b16 %v86
    %v123 = vpack.c.b16 %v108, %v107
    %v124 = vpack.c.b16 %v110, %v109
    %v125 = vpack.c.b16 %v112, %v111
    %v126 = vpack.c.b16 %v114, %v113
    %v127 = vpack.c.b16 %v116, %v115
    %v128 = vpack.c.b16 %v118, %v117
    %v129 = vpack.c.b16 %v120, %v119
    %v130 = vpack.c.b16 %v122, %v121
    %139 = vmatpush.bf16.msra.mxu0 %v130
    %140 = vmatpush.bf16.msra.mxu0 %v129
    %141 = vmatpush.bf16.msra.mxu0 %v128
    %142 = vmatpush.bf16.msra.mxu0 %v127
    %143 = vmatpush.bf16.msra.mxu0 %v126
    %144 = vmatpush.bf16.msra.mxu0 %v125
    %145 = vmatpush.bf16.msra.mxu0 %v124
    %146 = vmatpush.bf16.msra.mxu0 %v123
    %147 = vmatmul.bf16.gmra.mxu0 %v70
    %v148 = vpop.f32.mrf.mxu0
    %v149 = vadd.f32 %v89, %v148
    %v150 = vpop.f32.mrf.mxu0
    %v151 = vadd.f32 %v89, %v150
    %152 = vdwg.mxu0
    %v153 = vmax.f32 %v149, 0.0
    %v154 = vmax.f32 %v151, 0.0
    %v155 = vpack.c.bf16 %v154, %v153
    %v156 = vld [vmem:[#allocation7] sm:$0xf]
    %v157 = vld [vmem:[#allocation7 + $0x4] sm:$0xf]
    %v158 = vld [vmem:[#allocation7 + $0x8] sm:$0xf]
    %v159 = vld [vmem:[#allocation7 + $0xc] sm:$0xf]
    %v160 = vld [vmem:[#allocation7 + $0x10] sm:$0xf]
    %v161 = vld [vmem:[#allocation7 + $0x14] sm:$0xf]
    %v162 = vld [vmem:[#allocation7 + $0x18] sm:$0xf]
    %v163 = vld [vmem:[#allocation7 + $0x1c] sm:$0xf]
    %v164 = vld [vmem:[#allocation7 + $0x20] sm:$0xf]
    %v165 = vld [vmem:[#allocation7 + $0x24] sm:$0xf]
    %v166 = vld [vmem:[#allocation7 + $0x28] sm:$0xf]
    %v167 = vld [vmem:[#allocation7 + $0x2c] sm:$0xf]
    %v168 = vld [vmem:[#allocation7 + $0x30] sm:$0xf]
    %v169 = vld [vmem:[#allocation7 + $0x34] sm:$0xf]
    %v170 = vld [vmem:[#allocation7 + $0x38] sm:$0xf]
    %v171 = vld [vmem:[#allocation7 + $0x3c] sm:$0xf]
    %v172 = vld [vmem:[%s4] sm:$0x1]
    %v174 = vperm.slane %v172, 0
    %v192 = vunpack.c.l.b16 %v156
    %v193 = vunpack.c.l.b16 %v157
    %v194 = vunpack.c.l.b16 %v158
    %v195 = vunpack.c.l.b16 %v159
    %v196 = vunpack.c.l.b16 %v160
    %v197 = vunpack.c.l.b16 %v161
    %v198 = vunpack.c.l.b16 %v162
    %v199 = vunpack.c.l.b16 %v163
    %v200 = vunpack.c.l.b16 %v164
    %v201 = vunpack.c.l.b16 %v165
    %v202 = vunpack.c.l.b16 %v166
    %v203 = vunpack.c.l.b16 %v167
    %v204 = vunpack.c.l.b16 %v168
    %v205 = vunpack.c.l.b16 %v169
    %v206 = vunpack.c.l.b16 %v170
    %v207 = vunpack.c.l.b16 %v171
    %v208 = vpack.c.b16 %v193, %v192
    %v209 = vpack.c.b16 %v195, %v194
    %v210 = vpack.c.b16 %v197, %v196
    %v211 = vpack.c.b16 %v199, %v198
    %v212 = vpack.c.b16 %v201, %v200
    %v213 = vpack.c.b16 %v203, %v202
    %v214 = vpack.c.b16 %v205, %v204
    %v215 = vpack.c.b16 %v207, %v206
    %224 = vmatpush.bf16.msra.mxu0 %v215
    %225 = vmatpush.bf16.msra.mxu0 %v214
    %226 = vmatpush.bf16.msra.mxu0 %v213
    %227 = vmatpush.bf16.msra.mxu0 %v212
    %228 = vmatpush.bf16.msra.mxu0 %v211
    %229 = vmatpush.bf16.msra.mxu0 %v210
    %230 = vmatpush.bf16.msra.mxu0 %v209
    %231 = vmatpush.bf16.msra.mxu0 %v208
    %232 = vmatmul.bf16.gmra.mxu0 %v155
    %v233 = vpop.f32.mrf.mxu0
    %v234 = vadd.f32 %v174, %v233
    %v235 = vpop.f32.mrf.mxu0
    %v236 = vadd.f32 %v174, %v235
    %237 = vdwg.mxu0
    %238 = vst [vmem:[#allocation8] sm:$0xff] %v234
    %239 = vst [vmem:[#allocation8 + $0x8] sm:$0xff] %v236
    // Predicated region
    $region34: #{tpu_custom_call.1} parent=1 // pred_check
      _
    $region35: #{tpu_custom_call.1} parent=1 // pred_check_branch
      %241 = sbr.rel (0) target = $region37
    $region36: #{tpu_custom_call.1} parent=1 // pred_region
      %243 = vsyncadd [#allocation4], 0
      %s244 = sshll.u32 [#allocation8], 4
      %s245 = int_to_ptr.vmem [resolvable:$true] %s244
      %s246 = sshll.u32 %s5, 4
      %s247 = int_to_ptr.hbm [resolvable:$true] %s246
      %252 = dma.vmem_to_hbm [thread:$0]  %s245, 256, %s247, [#allocation4], 128, 128, 8
    $region37: #{tpu_custom_call.1} parent=1 // pred_fallthru
      _
    // Predicated region
    $region38: #{tpu_custom_call.1} parent=1 // pred_check
      _
    $region39: #{tpu_custom_call.1} parent=1 // pred_check_branch
      %254 = sbr.rel (0) target = $region41
    $region40: #{tpu_custom_call.1} parent=1 // pred_region
      %256 = dma.done [#allocation4], 256
    $region41: #{tpu_custom_call.1} parent=1 // pred_fallthru
      _
    %257 = vsyncpa [#allocation3], 1
    %258 = vsyncpa [#allocation6], 1
    %259 = vsyncpa [#allocation4], 1

// kernel: tpu_custom_call.1
$region0: #{tpu_custom_call.1}
  #allocation0 [shape = 'u32[]', space=smem, size = 0x4, offset = 0x4, fixed_abs, tag = 'smem constant byte address 0x4 - core index']
  #allocation1 [shape = 'u32[72,128]{1,0:T(1,128)}', space=vmem, size = 0x9000, scoped, tag = 'internal scratch']
  %s0 = inlined_call_operand.hbm [shape: f32[16,128], index: 0, kind: input, shape index: {}]
  %s1 = inlined_call_operand.hbm [shape: bf16[128,128], index: 1, kind: input, shape index: {}]
  %s2 = inlined_call_operand.vmem [shape: f32[1,128], index: 2, kind: input, shape index: {}]
  %s3 = inlined_call_operand.hbm [shape: bf16[128,128], index: 3, kind: input, shape index: {}]
  %s4 = inlined_call_operand.vmem [shape: f32[1,128], index: 4, kind: input, shape index: {}]
  %s5 = inlined_call_operand.hbm [shape: f32[16,128], index: 5, kind: output, shape index: {}]
  %s6 = sld [smem:[#allocation0]]
  $region42: #{tpu_custom_call.1} parent=0
    _
  %s8 = ssub.s32 1, %s6
  %s9 = scalar_select 0, %s8, %s6
  $region1: #{tpu_custom_call.1} parent=0
    #allocation2 [shape = 'u8[8192]{0}', space=vmem, size = 0x2000, scoped, tag = 'input window, operand 0, single buffered']
    #allocation3 [shape = 's32[1]{0}', space=sflag, size = 0x4, scoped, tag = 'scoped memory for tpu_custom_call.1']
    #allocation4 [shape = 's32[1]{0}', space=sflag, size = 0x4, scoped, tag = 'scoped memory for tpu_custom_call.1']
    #allocation5 [shape = 'u8[32768]{0}', space=vmem, size = 0x8000, scoped, tag = 'input window, operand 1, single buffered']
    #allocation6 [shape = 's32[1]{0}', space=sflag, size = 0x4, scoped, tag = 'scoped memory for tpu_custom_call.1']
    #allocation7 [shape = 'u8[32768]{0}', space=vmem, size = 0x8000, scoped, tag = 'input window, operand 3, single buffered']
    #allocation8 [shape = 'u8[8192]{0}', space=vmem, size = 0x2000, scoped, tag = 'output window, operand 0, single buffered']
    %10 = vsyncpa [#allocation3], 0
    %11 = vsyncpa [#allocation6], 0
    %12 = vsyncpa [#allocation4], 0
    // Predicated region
    $region2: #{tpu_custom_call.1} parent=1 // pred_check
      _
    $region3: #{tpu_custom_call.1} parent=1 // pred_check_branch
      %14 = sbr.rel (0) target = $region5
    $region4: #{tpu_custom_call.1} parent=1 // pred_region
      %16 = vsyncadd [#allocation3], 0
      %s17 = sshll.u32 %s0, 4
      %s18 = int_to_ptr.hbm [resolvable:$true] %s17
      %s19 = sshll.u32 [#allocation2], 4
      %s20 = int_to_ptr.vmem [resolvable:$true] %s19
      %25 = dma.hbm_to_vmem [thread:$0]  %s18, 256, %s20, [#allocation3], 128, 128, 8
    $region5: #{tpu_custom_call.1} parent=1 // pred_fallthru
      _
    // Predicated region
    $region6: #{tpu_custom_call.1} parent=1 // pred_check
      _
    $region7: #{tpu_custom_call.1} parent=1 // pred_check_branch
      %27 = sbr.rel (0) target = $region9
    $region8: #{tpu_custom_call.1} parent=1 // pred_region
      %29 = vsyncadd [#allocation6], 0
      %s30 = sshll.u32 %s1, 4
      %s31 = int_to_ptr.hbm [resolvable:$true] %s30
      %s32 = sshll.u32 [#allocation5], 4
      %s33 = int_to_ptr.vmem [resolvable:$true] %s32
      %38 = dma.hbm_to_vmem [thread:$0]  %s31, 1024, %s33, [#allocation6], 64, 64, 4
    $region9: #{tpu_custom_call.1} parent=1 // pred_fallthru
      _
    // Predicated region
    $region10: #{tpu_custom_call.1} parent=1 // pred_check
      _
    $region11: #{tpu_custom_call.1} parent=1 // pred_check_branch
      %40 = sbr.rel (0) target = $region13
    $region12: #{tpu_custom_call.1} parent=1 // pred_region
      _
    $region13: #{tpu_custom_call.1} parent=1 // pred_fallthru
      _
    // Predicated region
    $region14: #{tpu_custom_call.1} parent=1 // pred_check
      _
    $region15: #{tpu_custom_call.1} parent=1 // pred_check_branch
      %42 = sbr.rel (0) target = $region17
    $region16: #{tpu_custom_call.1} parent=1 // pred_region
      %44 = vsyncadd [#allocation6], 0
      %s45 = sshll.u32 %s3, 4
      %s46 = int_to_ptr.hbm [resolvable:$true] %s45
      %s47 = sshll.u32 [#allocation7], 4
      %s48 = int_to_ptr.vmem [resolvable:$true] %s47
      %53 = dma.hbm_to_vmem [thread:$0]  %s46, 1024, %s48, [#allocation6], 64, 64, 4
    $region17: #{tpu_custom_call.1} parent=1 // pred_fallthru
      _
    // Predicated region
    $region18: #{tpu_custom_call.1} parent=1 // pred_check
      _
    $region19: #{tpu_custom_call.1} parent=1 // pred_check_branch
      %55 = sbr.rel (0) target = $region21
    $region20: #{tpu_custom_call.1} parent=1 // pred_region
      _
    $region21: #{tpu_custom_call.1} parent=1 // pred_fallthru
      _
    // Predicated region
    $region22: #{tpu_custom_call.1} parent=1 // pred_check
      _
    $region23: #{tpu_custom_call.1} parent=1 // pred_check_branch
      %57 = sbr.rel (0) target = $region25
    $region24: #{tpu_custom_call.1} parent=1 // pred_region
      %59 = dma.done [#allocation3], 256
    $region25: #{tpu_custom_call.1} parent=1 // pred_fallthru
      _
    // Predicated region
    $region26: #{tpu_custom_call.1} parent=1 // pred_check
      _
    $region27: #{tpu_custom_call.1} parent=1 // pred_check_branch
      %61 = sbr.rel (0) target = $region29
    $region28: #{tpu_custom_call.1} parent=1 // pred_region
      %63 = dma.done [#allocation6], 1024
    $region29: #{tpu_custom_call.1} parent=1 // pred_fallthru
      _
    // Predicated region
    $region30: #{tpu_custom_call.1} parent=1 // pred_check
      _
    $region31: #{tpu_custom_call.1} parent=1 // pred_check_branch
      %65 = sbr.rel (0) target = $region33
    $region32: #{tpu_custom_call.1} parent=1 // pred_region
      %67 = dma.done [#allocation6], 1024
    $region33: #{tpu_custom_call.1} parent=1 // pred_fallthru
      _
    %v68 = vld [vmem:[#allocation2] sm:$0xff]
    %v69 = vld [vmem:[#allocation2 + $0x8] sm:$0xff]
    %v70 = vpack.c.bf16 %v69, %v68
    %v71 = vld [vmem:[#allocation5] sm:$0xf]
    %v72 = vld [vmem:[#allocation5 + $0x4] sm:$0xf]
    %v73 = vld [vmem:[#allocation5 + $0x8] sm:$0xf]
    %v74 = vld [vmem:[#allocation5 + $0xc] sm:$0xf]
    %v75 = vld [vmem:[#allocation5 + $0x10] sm:$0xf]
    %v76 = vld [vmem:[#allocation5 + $0x14] sm:$0xf]
    %v77 = vld [vmem:[#allocation5 + $0x18] sm:$0xf]
    %v78 = vld [vmem:[#allocation5 + $0x1c] sm:$0xf]
    %v79 = vld [vmem:[#allocation5 + $0x20] sm:$0xf]
    %v80 = vld [vmem:[#allocation5 + $0x24] sm:$0xf]
    %v81 = vld [vmem:[#allocation5 + $0x28] sm:$0xf]
    %v82 = vld [vmem:[#allocation5 + $0x2c] sm:$0xf]
    %v83 = vld [vmem:[#allocation5 + $0x30] sm:$0xf]
    %v84 = vld [vmem:[#allocation5 + $0x34] sm:$0xf]
    %v85 = vld [vmem:[#allocation5 + $0x38] sm:$0xf]
    %v86 = vld [vmem:[#allocation5 + $0x3c] sm:$0xf]
    %v87 = vld [vmem:[%s2] sm:$0x1]
    %v89 = vperm.slane %v87, 0
    %v107 = vunpack.c.l.b16 %v71
    %v108 = vunpack.c.l.b16 %v72
    %v109 = vunpack.c.l.b16 %v73
    %v110 = vunpack.c.l.b16 %v74
    %v111 = vunpack.c.l.b16 %v75
    %v112 = vunpack.c.l.b16 %v76
    %v113 = vunpack.c.l.b16 %v77
    %v114 = vunpack.c.l.b16 %v78
    %v115 = vunpack.c.l.b16 %v79
    %v116 = vunpack.c.l.b16 %v80
    %v117 = vunpack.c.l.b16 %v81
    %v118 = vunpack.c.l.b16 %v82
    %v119 = vunpack.c.l.b16 %v83
    %v120 = vunpack.c.l.b16 %v84
    %v121 = vunpack.c.l.b16 %v85
    %v122 = vunpack.c.l.b16 %v86
    %v123 = vpack.c.b16 %v108, %v107
    %v124 = vpack.c.b16 %v110, %v109
    %v125 = vpack.c.b16 %v112, %v111
    %v126 = vpack.c.b16 %v114, %v113
    %v127 = vpack.c.b16 %v116, %v115
    %v128 = vpack.c.b16 %v118, %v117
    %v129 = vpack.c.b16 %v120, %v119
    %v130 = vpack.c.b16 %v122, %v121
    %139 = vmatpush.bf16.msra.mxu0 %v130
    %140 = vmatpush.bf16.msra.mxu0 %v129
    %141 = vmatpush.bf16.msra.mxu0 %v128
    %142 = vmatpush.bf16.msra.mxu0 %v127
    %143 = vmatpush.bf16.msra.mxu0 %v126
    %144 = vmatpush.bf16.msra.mxu0 %v125
    %145 = vmatpush.bf16.msra.mxu0 %v124
    %146 = vmatpush.bf16.msra.mxu0 %v123
    %147 = vmatmul.bf16.gmra.mxu0 %v70
    %v148 = vpop.f32.mrf.mxu0
    %v149 = vadd.f32 %v89, %v148
    %v150 = vpop.f32.mrf.mxu0
    %v151 = vadd.f32 %v89, %v150
    %152 = vdwg.mxu0
    %v153 = vmax.f32 %v149, 0.0
    %v154 = vmax.f32 %v151, 0.0
    %v155 = vpack.c.bf16 %v154, %v153
    %v156 = vld [vmem:[#allocation7] sm:$0xf]
    %v157 = vld [vmem:[#allocation7 + $0x4] sm:$0xf]
    %v158 = vld [vmem:[#allocation7 + $0x8] sm:$0xf]
    %v159 = vld [vmem:[#allocation7 + $0xc] sm:$0xf]
    %v160 = vld [vmem:[#allocation7 + $0x10] sm:$0xf]
    %v161 = vld [vmem:[#allocation7 + $0x14] sm:$0xf]
    %v162 = vld [vmem:[#allocation7 + $0x18] sm:$0xf]
    %v163 = vld [vmem:[#allocation7 + $0x1c] sm:$0xf]
    %v164 = vld [vmem:[#allocation7 + $0x20] sm:$0xf]
    %v165 = vld [vmem:[#allocation7 + $0x24] sm:$0xf]
    %v166 = vld [vmem:[#allocation7 + $0x28] sm:$0xf]
    %v167 = vld [vmem:[#allocation7 + $0x2c] sm:$0xf]
    %v168 = vld [vmem:[#allocation7 + $0x30] sm:$0xf]
    %v169 = vld [vmem:[#allocation7 + $0x34] sm:$0xf]
    %v170 = vld [vmem:[#allocation7 + $0x38] sm:$0xf]
    %v171 = vld [vmem:[#allocation7 + $0x3c] sm:$0xf]
    %v172 = vld [vmem:[%s4] sm:$0x1]
    %v174 = vperm.slane %v172, 0
    %v192 = vunpack.c.l.b16 %v156
    %v193 = vunpack.c.l.b16 %v157
    %v194 = vunpack.c.l.b16 %v158
    %v195 = vunpack.c.l.b16 %v159
    %v196 = vunpack.c.l.b16 %v160
    %v197 = vunpack.c.l.b16 %v161
    %v198 = vunpack.c.l.b16 %v162
    %v199 = vunpack.c.l.b16 %v163
    %v200 = vunpack.c.l.b16 %v164
    %v201 = vunpack.c.l.b16 %v165
    %v202 = vunpack.c.l.b16 %v166
    %v203 = vunpack.c.l.b16 %v167
    %v204 = vunpack.c.l.b16 %v168
    %v205 = vunpack.c.l.b16 %v169
    %v206 = vunpack.c.l.b16 %v170
    %v207 = vunpack.c.l.b16 %v171
    %v208 = vpack.c.b16 %v193, %v192
    %v209 = vpack.c.b16 %v195, %v194
    %v210 = vpack.c.b16 %v197, %v196
    %v211 = vpack.c.b16 %v199, %v198
    %v212 = vpack.c.b16 %v201, %v200
    %v213 = vpack.c.b16 %v203, %v202
    %v214 = vpack.c.b16 %v205, %v204
    %v215 = vpack.c.b16 %v207, %v206
    %224 = vmatpush.bf16.msra.mxu0 %v215
    %225 = vmatpush.bf16.msra.mxu0 %v214
    %226 = vmatpush.bf16.msra.mxu0 %v213
    %227 = vmatpush.bf16.msra.mxu0 %v212
    %228 = vmatpush.bf16.msra.mxu0 %v211
    %229 = vmatpush.bf16.msra.mxu0 %v210
    %230 = vmatpush.bf16.msra.mxu0 %v209
    %231 = vmatpush.bf16.msra.mxu0 %v208
    %232 = vmatmul.bf16.gmra.mxu0 %v155
    %v233 = vpop.f32.mrf.mxu0
    %v234 = vadd.f32 %v174, %v233
    %v235 = vpop.f32.mrf.mxu0
    %v236 = vadd.f32 %v174, %v235
    %237 = vdwg.mxu0
    %238 = vst [vmem:[#allocation8] sm:$0xff] %v234
    %239 = vst [vmem:[#allocation8 + $0x8] sm:$0xff] %v236
    // Predicated region
    $region34: #{tpu_custom_call.1} parent=1 // pred_check
      _
    $region35: #{tpu_custom_call.1} parent=1 // pred_check_branch
      %241 = sbr.rel (0) target = $region37
    $region36: #{tpu_custom_call.1} parent=1 // pred_region
      %243 = vsyncadd [#allocation4], 0
      %s244 = sshll.u32 [#allocation8], 4
      %s245 = int_to_ptr.vmem [resolvable:$true] %s244
      %s246 = sshll.u32 %s5, 4
      %s247 = int_to_ptr.hbm [resolvable:$true] %s246
      %252 = dma.vmem_to_hbm [thread:$0]  %s245, 256, %s247, [#allocation4], 128, 128, 8
    $region37: #{tpu_custom_call.1} parent=1 // pred_fallthru
      _
    // Predicated region
    $region38: #{tpu_custom_call.1} parent=1 // pred_check
      _
    $region39: #{tpu_custom_call.1} parent=1 // pred_check_branch
      %254 = sbr.rel (0) target = $region41
    $region40: #{tpu_custom_call.1} parent=1 // pred_region
      %256 = dma.done [#allocation4], 256
    $region41: #{tpu_custom_call.1} parent=1 // pred_fallthru
      _
    %257 = vsyncpa [#allocation3], 1
    %258 = vsyncpa [#allocation6], 1
    %259 = vsyncpa [#allocation4], 1

</llo_original>
